<compile_context>
chip_gen: v7x
topology: tpu7x:2x2x1
jax: 0.10.0
libtpu: 0.0.40
codegen_flags: <defaults>
</compile_context>

<pallas_src>
import functools

import jax
import jax.numpy as jnp
from jax import lax
from jax.experimental import pallas as pl
from jax.experimental.pallas import tpu as pltpu

DEFAULT_FOCAL_ALPHA = 0.25
DEFAULT_FOCAL_GAMMA = 2.0

WIDTH = 128            # lane width: each row is one full lane group
MAX_BLOCK_ROWS = 4096  # 4096 x 128 f32 = 2 MiB per input stream per grid step
CHUNK_ROWS = 512       # in-kernel row chunk: bounds live intermediates to ~256 KiB


def _pow_static(v, gamma):
    """v ** gamma with a repeated-multiply fast path for small integer gamma
    (avoids exp+log on the EUP for the default gamma == 2)."""
    g = float(gamma)
    if g == 0.0:
        return jnp.ones_like(v)
    if g == int(g) and 1 <= int(g) <= 8:
        out = v
        for _ in range(int(g) - 1):
            out = out * v
        return out
    return jnp.power(v, jnp.float32(g))


def _focal_terms_f32(x, t, alpha, gamma):
    """Elementwise focal-loss terms in f32, matching the PyTorch module:
       ce = BCE_with_logits(x, t);  fl = alpha * (1 - exp(-ce))**gamma * ce."""
    x = x.astype(jnp.float32)
    t = t.astype(jnp.float32)
    e = jnp.exp(-jnp.abs(x))
    # Numerically stable BCE-with-logits: max(x,0) - x*t + log(1 + exp(-|x|)).
    ce = jnp.maximum(x, 0.0) - x * t + jnp.log(1.0 + e)
    pt = jnp.exp(-ce)
    return jnp.float32(alpha) * _pow_static(1.0 - pt, gamma) * ce


def _focal_loss_kernel(x_ref, t_ref, out_ref, *, alpha, gamma,
                       block_rows, width, chunk_rows):
    """One grid step: reduce a (block_rows, width) tile of focal-loss terms into a
    lane/sublane-dense (8, width) f32 partial sum.  The reshape below splits rows
    on native (8, 128) tile boundaries, so the reduction is a chain of whole-vreg
    VPU adds (no cross-lane reduce, no serial accumulation across grid steps)."""
    n_chunks = block_rows // chunk_rows   # static Python int

    def chunk_partial(x_raw, t_raw):
        fl = _focal_terms_f32(x_raw, t_raw, alpha, gamma)
        return fl.reshape(chunk_rows // 8, 8, width).sum(axis=0)

    if n_chunks == 1:
        out_ref[0] = chunk_partial(x_ref[...], t_ref[...])
    else:
        def body(c, acc):
            r = pl.multiple_of(c * chunk_rows, chunk_rows)
            return acc + chunk_partial(x_ref[pl.ds(r, chunk_rows), :],
                                       t_ref[pl.ds(r, chunk_rows), :])
        out_ref[0] = lax.fori_loop(0, n_chunks, body,
                                   jnp.zeros((8, width), jnp.float32),
                                   unroll=True)


def focal_loss(inputs, targets, alpha=DEFAULT_FOCAL_ALPHA, gamma=DEFAULT_FOCAL_GAMMA):
    """Pallas focal loss (mean).  inputs/targets: identical shape, e.g. NCHW logits/labels."""
    assert inputs.shape == targets.shape
    n = int(inputs.size)
    assert n > 0

    x_flat = inputs.reshape(-1)    # contiguous reshape: no copy
    t_flat = targets.reshape(-1)

    rem = n % WIDTH
    if rem != 0:
        # Rare fallback (element count not lane-aligned): pad the final partial row
        # with (x=200, t=1), which yields ce == 0 and focal term == 0 exactly, so
        # the sum is unaffected.  This is the only path that copies the inputs.
        pad = WIDTH - rem
        x_flat = jnp.pad(x_flat, (0, pad), constant_values=200.0)
        t_flat = jnp.pad(t_flat, (0, pad), constant_values=1.0)

    rows = x_flat.shape[0] // WIDTH
    x2 = x_flat.reshape(rows, WIDTH)   # free, lane-dense view of the same bytes
    t2 = t_flat.reshape(rows, WIDTH)

    rows_bulk = (rows // 8) * 8        # rows coverable by (8,128)-tiled blocks

    total = jnp.zeros((), jnp.float32)
    rows_covered = 0
    if rows_bulk >= 8:
        # Largest block of the form 8 * 2**k that fits, capped at 2 MiB/stream.
        block_rows = 8 << ((rows_bulk // 8).bit_length() - 1)
        block_rows = min(block_rows, MAX_BLOCK_ROWS)
        grid_n = rows_bulk // block_rows
        if grid_n == 1 and block_rows > 8:
            # Prefer >= 2 grid steps so v7x can split them across its 2 TensorCores.
            block_rows //= 2
            grid_n = rows_bulk // block_rows
        chunk_rows = min(block_rows, CHUNK_ROWS)   # both are 8 * 2**k -> divides evenly
        rows_covered = grid_n * block_rows

        kernel = functools.partial(
            _focal_loss_kernel,
            alpha=float(alpha), gamma=float(gamma),
            block_rows=block_rows, width=WIDTH, chunk_rows=chunk_rows)

        partials = pl.pallas_call(
            kernel,
            out_shape=jax.ShapeDtypeStruct((grid_n, 8, WIDTH), jnp.float32),
            grid_spec=pltpu.PrefetchScalarGridSpec(
                num_scalar_prefetch=0,
                grid=(grid_n,),
                in_specs=[
                    pl.BlockSpec((block_rows, WIDTH), lambda i: (i, 0)),
                    pl.BlockSpec((block_rows, WIDTH), lambda i: (i, 0)),
                ],
                out_specs=pl.BlockSpec((1, 8, WIDTH), lambda i: (i, 0, 0)),
            ),
            compiler_params=pltpu.CompilerParams(
                # Every grid step writes its own partial block -> fully parallel.
                dimension_semantics=("parallel",),
            ),
        )(x2, t2)
        total = jnp.sum(partials, dtype=jnp.float32)

    if rows_covered < rows:
        # Leftover (< 1 block + 7 rows): tiny, do it with plain jnp.
        x_tail = x2[rows_covered:, :]
        t_tail = t2[rows_covered:, :]
        total = total + jnp.sum(_focal_terms_f32(x_tail, t_tail, alpha, gamma),
                                dtype=jnp.float32)

    return total / jnp.float32(n)


def _focal_loss_ref(inputs, targets, alpha=DEFAULT_FOCAL_ALPHA, gamma=DEFAULT_FOCAL_GAMMA):
    """Pure-JAX reference mirroring the PyTorch module."""
    x = inputs.astype(jnp.float32)
    t = targets.astype(jnp.float32)
    ce = jnp.maximum(x, 0.0) - x * t + jnp.log1p(jnp.exp(-jnp.abs(x)))
    pt = jnp.exp(-ce)
    return jnp.mean(alpha * (1.0 - pt) ** gamma * ce)


if __name__ == "__main__":
    key = jax.random.PRNGKey(0)
    k1, k2, k3, k4, k5, k6 = jax.random.split(key, 6)

    # 1) NCHW logits / binary targets (lane-aligned; kernel covers everything, grid=2).
    B, C, H, W = 2, 4, 16, 16
    x = jax.random.normal(k1, (B, C, H, W), dtype=jnp.float32)
    t = jax.random.bernoulli(k2, 0.3, (B, C, H, W)).astype(jnp.float32)
    loss = jax.block_until_ready(focal_loss(x, t))
    ref = _focal_loss_ref(x, t)
    assert jnp.allclose(loss, ref, rtol=1e-5, atol=1e-6), (loss, ref)

    # 2) Awkward size: exercises the zero-loss padding + jnp tail paths.
    xo = jax.random.normal(k3, (3, 3, 9, 13), dtype=jnp.float32)
    to = jax.random.bernoulli(k4, 0.3, (3, 3, 9, 13)).astype(jnp.float32)
    loss_o = jax.block_until_ready(focal_loss(xo, to))
    ref_o = _focal_loss_ref(xo, to)
    assert jnp.allclose(loss_o, ref_o, rtol=1e-5, atol=1e-6), (loss_o, ref_o)

    # 3) Larger input: exercises the in-kernel multi-chunk accumulation path.
    xl = jax.random.normal(k5, (4, 4, 128, 128), dtype=jnp.float32)
    tl = jax.random.bernoulli(k6, 0.3, (4, 4, 128, 128)).astype(jnp.float32)
    loss_l = jax.block_until_ready(focal_loss(xl, tl))
    ref_l = _focal_loss_ref(xl, tl)
    assert jnp.allclose(loss_l, ref_l, rtol=1e-5, atol=1e-6), (loss_l, ref_l)

    print("KERNEL_OK")
</pallas_src>

<mosaic_0001>
module attributes {stable_mosaic.version = 11 : i64} {
  func.func @_focal_loss_kernel(%arg0: i32, %arg1: memref<8x128xf32, #tpu.memory_space<vmem>>, %arg2: memref<8x128xf32, #tpu.memory_space<vmem>>, %arg3: memref<1x8x128xf32, #tpu.memory_space<vmem>>) attributes {dimension_semantics = [#tpu.dimension_semantics<parallel>], iteration_bounds = array<i64: 2>, scalar_prefetch = 0 : i64, scratch_operands = 0 : i64, tpu.core_type = #tpu.core_type<tc>, window_params = [{transform_indices = @transform_0, window_bounds = array<i64: 8, 128>}, {transform_indices = @transform_1, window_bounds = array<i64: 8, 128>}, {transform_indices = @transform_2, window_bounds = array<i64: 1, 8, 128>}]} {
    %c0 = arith.constant 0 : index
    %c0_0 = arith.constant 0 : index
    %0 = vector.load %arg1[%c0, %c0_0] : memref<8x128xf32, #tpu.memory_space<vmem>>, vector<8x128xf32>
    %c0_1 = arith.constant 0 : index
    %c0_2 = arith.constant 0 : index
    %1 = vector.load %arg2[%c0_1, %c0_2] : memref<8x128xf32, #tpu.memory_space<vmem>>, vector<8x128xf32>
    %2 = math.absf %0 : vector<8x128xf32>
    %cst = arith.constant 0.000000e+00 : f32
    %3 = vector.broadcast %cst : f32 to vector<8x128xf32>
    %4 = arith.subf %3, %2 : vector<8x128xf32>
    %5 = math.exp %4 : vector<8x128xf32>
    %cst_3 = arith.constant 0.000000e+00 : f32
    %6 = vector.broadcast %cst_3 : f32 to vector<8x128xf32>
    %7 = arith.maximumf %0, %6 : vector<8x128xf32>
    %8 = arith.mulf %0, %1 : vector<8x128xf32>
    %9 = arith.subf %7, %8 : vector<8x128xf32>
    %cst_4 = arith.constant 1.000000e+00 : f32
    %10 = vector.broadcast %cst_4 : f32 to vector<8x128xf32>
    %11 = arith.addf %10, %5 : vector<8x128xf32>
    %12 = math.log %11 : vector<8x128xf32>
    %13 = arith.addf %9, %12 : vector<8x128xf32>
    %cst_5 = arith.constant 0.000000e+00 : f32
    %14 = vector.broadcast %cst_5 : f32 to vector<8x128xf32>
    %15 = arith.subf %14, %13 : vector<8x128xf32>
    %16 = math.exp %15 : vector<8x128xf32>
    %cst_6 = arith.constant 1.000000e+00 : f32
    %17 = vector.broadcast %cst_6 : f32 to vector<8x128xf32>
    %18 = arith.subf %17, %16 : vector<8x128xf32>
    %19 = arith.mulf %18, %18 : vector<8x128xf32>
    %cst_7 = arith.constant 2.500000e-01 : f32
    %20 = vector.broadcast %cst_7 : f32 to vector<8x128xf32>
    %21 = arith.mulf %20, %19 : vector<8x128xf32>
    %22 = arith.mulf %21, %13 : vector<8x128xf32>
    %23 = vector.shape_cast %22 : vector<8x128xf32> to vector<1x8x128xf32>
    %cst_8 = arith.constant dense<0.000000e+00> : vector<8x128xf32>
    %24 = vector.multi_reduction <add>, %23, %cst_8 [0] : vector<1x8x128xf32> to vector<8x128xf32>
    %c0_9 = arith.constant 0 : index
    %c0_10 = arith.constant 0 : index
    %c0_11 = arith.constant 0 : index
    %25 = vector.load %arg3[%c0_9, %c0_10, %c0_11] : memref<1x8x128xf32, #tpu.memory_space<vmem>>, vector<1x8x128xf32>
    %26 = vector.shape_cast %25 : vector<1x8x128xf32> to vector<8x128xf32>
    %27 = vector.shape_cast %24 : vector<8x128xf32> to vector<1x8x128xf32>
    tpu.vector_store %arg3[%c0_9, %c0_10, %c0_11], %27 {strides = array<i32>} : memref<1x8x128xf32, #tpu.memory_space<vmem>>, vector<1x8x128xf32>,
    return
  }
  func.func @transform_0(%arg0: i32) -> (i32, i32) {
    %c0_i32 = arith.constant 0 : i32
    %c0_i32_0 = arith.constant 0 : i32
    return %arg0, %c0_i32 : i32, i32
  }
  func.func @transform_1(%arg0: i32) -> (i32, i32) {
    %c0_i32 = arith.constant 0 : i32
    %c0_i32_0 = arith.constant 0 : i32
    return %arg0, %c0_i32 : i32, i32
  }
  func.func @transform_2(%arg0: i32) -> (i32, i32, i32) {
    %c0_i32 = arith.constant 0 : i32
    %c0_i32_0 = arith.constant 0 : i32
    %c0_i32_1 = arith.constant 0 : i32
    return %arg0, %c0_i32, %c0_i32_0 : i32, i32, i32
  }
}

</mosaic_0001>

<llo_original>
// kernel: tpu_custom_call.1
$region0: #{tpu_custom_call.1}
  #allocation0 [shape = 'u32[]', space=smem, size = 0x4, offset = 0x4, fixed_abs, tag = 'smem constant byte address 0x4 - core index']
  #allocation1 [shape = 'u32[144,128]{1,0:T(1,128)}', space=vmem, size = 0x12000, scoped, tag = 'internal scratch']
  %s0 = inlined_call_operand.hbm [shape: f32[16,128], index: 0, kind: input, shape index: {}]
  %s1 = inlined_call_operand.hbm [shape: f32[16,128], index: 1, kind: input, shape index: {}]
  %s2 = inlined_call_operand.hbm [shape: f32[2,8,128], index: 2, kind: output, shape index: {}]
  %s3 = sld [smem:[#allocation0]]
  $region49: #{tpu_custom_call.1} parent=0
    _
  %s5 = ssub.s32 1, %s3
  %s6 = scalar_select 0, %s5, %s3
  $region1: #{tpu_custom_call.1} parent=0
    #allocation2 [shape = 'u8[8192]{0}', space=vmem, size = 0x2000, scoped, tag = 'input window, operand 0']
    #allocation3 [shape = 's32[2]{0}', space=sflag, size = 0x8, scoped, tag = 'scoped memory for tpu_custom_call.1']
    #allocation4 [shape = 's32[2]{0}', space=sflag, size = 0x8, scoped, tag = 'scoped memory for tpu_custom_call.1']
    #allocation5 [shape = 'u8[8192]{0}', space=vmem, size = 0x2000, scoped, tag = 'input window, operand 1']
    #allocation6 [shape = 's32[2]{0}', space=sflag, size = 0x8, scoped, tag = 'scoped memory for tpu_custom_call.1']
    #allocation7 [shape = 'u8[8192]{0}', space=vmem, size = 0x2000, scoped, tag = 'output window, operand 0']
    %7 = vsyncpa [#allocation3], 0
    %s8 = scalar_lea.sflag [#allocation3], 1
    %9 = vsyncpa %s8, 0
    %10 = vsyncpa [#allocation6], 0
    %s11 = scalar_lea.sflag [#allocation6], 1
    %12 = vsyncpa %s11, 0
    %13 = vsyncpa [#allocation4], 0
    %s14 = scalar_lea.sflag [#allocation4], 1
    %15 = vsyncpa %s14, 0
    loop: start=0, step=1, limit=4
    $region2: #{tpu_custom_call.1} parent=1 // loop_pre_header
      _
    $region3: #{tpu_custom_call.1} parent=1 // loop_header
      %s17 = sphi 0, %s21
      %p18 = scmp.ge.s32.totalorder %s17, 4
      %s27 = sphi 0, %s29
      %s30 = sphi 0, %s27
      %s31 = sphi 0, %s30
      %s47 = sphi 0, %s31
      %s53 = sphi 0, %s55
      %s56 = sphi 0, %s53
      %s57 = sphi 0, %s56
      %s73 = sphi 0, %s57
      %s79 = sphi 0, %s81
      %s82 = sphi 0, %s79
      %s83 = sphi 0, %s82
      %s99 = sphi 0, %s83
    $region4: #{tpu_custom_call.1} parent=1 // loop_header_branch
      %20 = sbr.rel (%p18) target = $region8
    $region5: #{tpu_custom_call.1} parent=1 // loop_body
      %s22 = ssub.s32 %s17, 1
      %s23 = ssub.s32 %s17, 2
      %s24 = sadd.s32 %s17, 1
      %s25 = ssub.s32 %s17, %s24
      %p26 = scmp.eq.s32.totalorder %s25, 0
      %s28 = sadd.s32 %s27, 1
      %s29 = scalar_select %p26, %s27, %s28
      %p32 = pneg %p26
      %p33 = scmp.eq.s32.totalorder %s17, 1
      %p34 = por %p32, %p33
      %p35 = scmp.ne.s32.totalorder %s27, %s30
      %p36 = scmp.eq.s32.totalorder %s17, 0
      %p37 = por %p35, %p36
      %p38 = scmp.ne.s32.totalorder %s27, %s30
      %p39 = scmp.eq.s32.totalorder %s22, 1
      %p40 = por %p38, %p39
      %p41 = scmp.ne.s32.totalorder %s30, %s31
      %p42 = scmp.eq.s32.totalorder %s22, 0
      %p43 = por %p41, %p42
      %p44 = scmp.ne.s32.totalorder %s30, %s31
      %p45 = scmp.eq.s32.totalorder %s23, 1
      %p46 = por %p44, %p45
      %p48 = scmp.ne.s32.totalorder %s31, %s47
      %p49 = scmp.eq.s32.totalorder %s23, 0
      %p50 = por %p48, %p49
      %s51 = ssub.s32 %s17, %s24
      %p52 = scmp.eq.s32.totalorder %s51, 0
      %s54 = sadd.s32 %s53, 1
      %s55 = scalar_select %p52, %s53, %s54
      %p58 = pneg %p52
      %p59 = scmp.eq.s32.totalorder %s17, 1
      %p60 = por %p58, %p59
      %p61 = scmp.ne.s32.totalorder %s53, %s56
      %p62 = scmp.eq.s32.totalorder %s17, 0
      %p63 = por %p61, %p62
      %p64 = scmp.ne.s32.totalorder %s53, %s56
      %p65 = scmp.eq.s32.totalorder %s22, 1
      %p66 = por %p64, %p65
      %p67 = scmp.ne.s32.totalorder %s56, %s57
      %p68 = scmp.eq.s32.totalorder %s22, 0
      %p69 = por %p67, %p68
      %p70 = scmp.ne.s32.totalorder %s56, %s57
      %p71 = scmp.eq.s32.totalorder %s23, 1
      %p72 = por %p70, %p71
      %p74 = scmp.ne.s32.totalorder %s57, %s73
      %p75 = scmp.eq.s32.totalorder %s23, 0
      %p76 = por %p74, %p75
      %s77 = ssub.s32 %s17, %s24
      %p78 = scmp.eq.s32.totalorder %s77, 0
      %s80 = sadd.s32 %s79, 1
      %s81 = scalar_select %p78, %s79, %s80
      %p84 = pneg %p78
      %p85 = scmp.eq.s32.totalorder %s17, 1
      %p86 = por %p84, %p85
      %p87 = scmp.ne.s32.totalorder %s79, %s82
      %p88 = scmp.eq.s32.totalorder %s17, 0
      %p89 = por %p87, %p88
      %p90 = scmp.ne.s32.totalorder %s79, %s82
      %p91 = scmp.eq.s32.totalorder %s22, 1
      %p92 = por %p90, %p91
      %p93 = scmp.ne.s32.totalorder %s82, %s83
      %p94 = scmp.eq.s32.totalorder %s22, 0
      %p95 = por %p93, %p94
      %p96 = scmp.ne.s32.totalorder %s82, %s83
      %p97 = scmp.eq.s32.totalorder %s23, 1
      %p98 = por %p96, %p97
      %p100 = scmp.ne.s32.totalorder %s83, %s99
      %p101 = scmp.eq.s32.totalorder %s23, 0
      %p102 = por %p100, %p101
      %p103 = scmp.le.s32.totalorder 1, %s17
      %p104 = scmp.lt.s32.totalorder %s17, 3
      %p105 = pnand %p103, %p104
      %p106 = pneg %p105
      // Predicated region
      $region9: #{tpu_custom_call.1} parent=5 // pred_check
        _
      $region10: #{tpu_custom_call.1} parent=5 // pred_check_branch
        %108 = sbr.rel (%p105) target = $region12
      $region11: #{tpu_custom_call.1} parent=5 // pred_region
        %s109 = ssub.s32 %s17, 1
      $region12: #{tpu_custom_call.1} parent=5 // pred_fallthru
        _
      %p110 = scmp.lt.s32.totalorder %s17, 2
      // Predicated region
      $region13: #{tpu_custom_call.1} parent=5 // pred_check
        %p111 = pneg %p110
      $region14: #{tpu_custom_call.1} parent=5 // pred_check_branch
        %113 = sbr.rel (%p111) target = $region16
      $region15: #{tpu_custom_call.1} parent=5 // pred_region
        // Predicated region
        $region17: #{tpu_custom_call.1} parent=15 // pred_check
          %p114 = pneg %p37
        $region18: #{tpu_custom_call.1} parent=15 // pred_check_branch
          %116 = sbr.rel (%p114) target = $region20
        $region19: #{tpu_custom_call.1} parent=15 // pred_region
          %s117 = sand.u32 %s27, 1
          %s118 = scalar_lea.sflag [#allocation3], %s117
          %s119 = sand.u32 %s27, 1
          %s120 = smul.addr %s119, 8
          %s121 = scalar_lea.vmem [#allocation2], %s120
          %s123 = ssub.s32 128, 128
          %124 = vsyncadd %s118, %s123
          %s125 = smul.addr %s17, 128
          %s126 = scalar_lea.hbm %s0, %s125
          %s128 = sshll.u32 %s121, 4
          %s129 = int_to_ptr.vmem [resolvable:$true] %s128
          %131 = dma.hbm_to_vmem [thread:$0]  %s126, 128, %s129, %s118
        $region20: #{tpu_custom_call.1} parent=15 // pred_fallthru
          _
        // Predicated region
        $region21: #{tpu_custom_call.1} parent=15 // pred_check
          %p132 = pneg %p63
        $region22: #{tpu_custom_call.1} parent=15 // pred_check_branch
          %134 = sbr.rel (%p132) target = $region24
        $region23: #{tpu_custom_call.1} parent=15 // pred_region
          %s135 = sand.u32 %s53, 1
          %s136 = scalar_lea.sflag [#allocation6], %s135
          %s137 = sand.u32 %s53, 1
          %s138 = smul.addr %s137, 8
          %s139 = scalar_lea.vmem [#allocation5], %s138
          %s141 = ssub.s32 128, 128
          %142 = vsyncadd %s136, %s141
          %s143 = smul.addr %s17, 128
          %s144 = scalar_lea.hbm %s1, %s143
          %s146 = sshll.u32 %s139, 4
          %s147 = int_to_ptr.vmem [resolvable:$true] %s146
          %149 = dma.hbm_to_vmem [thread:$0]  %s144, 128, %s147, %s136
        $region24: #{tpu_custom_call.1} parent=15 // pred_fallthru
          _
      $region16: #{tpu_custom_call.1} parent=5 // pred_fallthru
        _
      %p150 = scmp.le.s32.totalorder 1, %s17
      %p151 = scmp.lt.s32.totalorder %s17, 3
      %p152 = pnand %p150, %p151
      %p153 = pneg %p152
      // Predicated region
      $region25: #{tpu_custom_call.1} parent=5 // pred_check
        _
      $region26: #{tpu_custom_call.1} parent=5 // pred_check_branch
        %155 = sbr.rel (%p152) target = $region28
      $region27: #{tpu_custom_call.1} parent=5 // pred_region
        %s156 = ssub.s32 %s17, 1
        %s157 = sand.u32 %s30, 1
        %s158 = scalar_lea.sflag [#allocation3], %s157
        %s159 = sand.u32 %s30, 1
        %s160 = smul.addr %s159, 8
        %s161 = scalar_lea.vmem [#allocation2], %s160
        // Predicated region
        $region29: #{tpu_custom_call.1} parent=27 // pred_check
          %p162 = pneg %p43
        $region30: #{tpu_custom_call.1} parent=27 // pred_check_branch
          %164 = sbr.rel (%p162) target = $region32
        $region31: #{tpu_custom_call.1} parent=27 // pred_region
          %165 = dma.done %s158, 128
        $region32: #{tpu_custom_call.1} parent=27 // pred_fallthru
          _
        %s166 = sand.u32 %s56, 1
        %s167 = scalar_lea.sflag [#allocation6], %s166
        %s168 = sand.u32 %s56, 1
        %s169 = smul.addr %s168, 8
        %s170 = scalar_lea.vmem [#allocation5], %s169
        // Predicated region
        $region33: #{tpu_custom_call.1} parent=27 // pred_check
          %p171 = pneg %p69
        $region34: #{tpu_custom_call.1} parent=27 // pred_check_branch
          %173 = sbr.rel (%p171) target = $region36
        $region35: #{tpu_custom_call.1} parent=27 // pred_region
          %174 = dma.done %s167, 128
        $region36: #{tpu_custom_call.1} parent=27 // pred_fallthru
          _
        %s175 = sand.u32 %s30, 1
        %s176 = scalar_lea.sflag [#allocation3], %s175
        %s177 = sand.u32 %s30, 1
        %s178 = smul.addr %s177, 8
        %s179 = scalar_lea.vmem [#allocation2], %s178
        %p180 = pneg %p43
        %p181 = pneg %p40
        %s182 = sand.u32 %s56, 1
        %s183 = scalar_lea.sflag [#allocation6], %s182
        %s184 = sand.u32 %s56, 1
        %s185 = smul.addr %s184, 8
        %s186 = scalar_lea.vmem [#allocation5], %s185
        %p187 = pneg %p69
        %p188 = pneg %p66
        %p189 = pneg %p95
        %p190 = pneg %p92
        %s191 = sand.u32 %s82, 1
        %s192 = scalar_lea.sflag [#allocation4], %s191
        %s193 = sand.u32 %s82, 1
        %s194 = smul.addr %s193, 8
        %s195 = scalar_lea.vmem [#allocation7], %s194
        %v196 = vld [vmem:[%s161] sm:$0xff]
        %v197 = vld [vmem:[%s170] sm:$0xff]
        %v198 = vand.u32 2147483647, %v196
        %v199 = vsub.f32 0.0, %v198
        %v200 = vmul.f32 %v199, 1.442695
        %v201 = vpow.pop %v200
        %v202 = vmax.f32 %v196, 0.0
        %v203 = vmul.f32 %v196, %v197
        %v204 = vsub.f32 %v202, %v203
        %v205 = vadd.f32 %v201, 1.0
        %v206 = vlog2.pop %v205
        %v207 = vmul.f32 %v206, 0.6931472
        %v208 = vadd.f32 %v204, %v207
        %v209 = vsub.f32 0.0, %v208
        %v210 = vmul.f32 %v209, 1.442695
        %v211 = vpow.pop %v210
        %v212 = vsub.f32 1.0, %v211
        %v213 = vmul.f32 %v212, %v212
        %v214 = vmul.f32 %v213, 0.25
        %v215 = vmul.f32 %v214, %v208
        %v216 = vadd.f32 %v215, 0.0
        %217 = vst [vmem:[%s195] sm:$0xff] %v216
        %s218 = sand.u32 %s82, 1
        %s219 = scalar_lea.sflag [#allocation4], %s218
        %s220 = sand.u32 %s82, 1
        %s221 = smul.addr %s220, 8
        %s222 = scalar_lea.vmem [#allocation7], %s221
        // Predicated region
        $region37: #{tpu_custom_call.1} parent=27 // pred_check
          %p223 = pneg %p92
        $region38: #{tpu_custom_call.1} parent=27 // pred_check_branch
          %225 = sbr.rel (%p223) target = $region40
        $region39: #{tpu_custom_call.1} parent=27 // pred_region
          %s227 = ssub.s32 128, 128
          %228 = vsyncadd %s219, %s227
          %s229 = smul.addr %s22, 128
          %s230 = scalar_lea.hbm %s2, %s229
          %s232 = sshll.u32 %s222, 4
          %s233 = int_to_ptr.vmem [resolvable:$true] %s232
          %235 = dma.vmem_to_hbm [thread:$0]  %s233, 128, %s230, %s219
        $region40: #{tpu_custom_call.1} parent=27 // pred_fallthru
          _
      $region28: #{tpu_custom_call.1} parent=5 // pred_fallthru
        _
      %p236 = scmp.le.s32.totalorder 2, %s17
      // Predicated region
      $region41: #{tpu_custom_call.1} parent=5 // pred_check
        %p237 = pneg %p236
      $region42: #{tpu_custom_call.1} parent=5 // pred_check_branch
        %239 = sbr.rel (%p237) target = $region44
      $region43: #{tpu_custom_call.1} parent=5 // pred_region
        %s240 = ssub.s32 %s17, 2
        // Predicated region
        $region45: #{tpu_custom_call.1} parent=43 // pred_check
          %p241 = pneg %p98
        $region46: #{tpu_custom_call.1} parent=43 // pred_check_branch
          %243 = sbr.rel (%p241) target = $region48
        $region47: #{tpu_custom_call.1} parent=43 // pred_region
          %s244 = sand.u32 %s83, 1
          %s245 = scalar_lea.sflag [#allocation4], %s244
          %s246 = sand.u32 %s83, 1
          %s247 = smul.addr %s246, 8
          %s248 = scalar_lea.vmem [#allocation7], %s247
          %249 = dma.done %s245, 128
        $region48: #{tpu_custom_call.1} parent=43 // pred_fallthru
          _
      $region44: #{tpu_custom_call.1} parent=5 // pred_fallthru
        _
    $region6: #{tpu_custom_call.1} parent=1 // loop_footer
      %s21 = sadd.s32 1, %s17
    $region7: #{tpu_custom_call.1} parent=1 // loop_footer_branch
      %16 = sbr.rel target = $region3
    $region8: #{tpu_custom_call.1} parent=1 // loop_exit
      _
    %250 = vsyncpa [#allocation3], 1
    %s251 = scalar_lea.sflag [#allocation3], 1
    %252 = vsyncpa %s251, 1
    %253 = vsyncpa [#allocation6], 1
    %s254 = scalar_lea.sflag [#allocation6], 1
    %255 = vsyncpa %s254, 1
    %256 = vsyncpa [#allocation4], 1
    %s257 = scalar_lea.sflag [#allocation4], 1
    %258 = vsyncpa %s257, 1

</llo_original>
